<compile_context>
chip_gen: v6e
topology: v6e:2x2x1
jax: 0.10.0
libtpu: 0.0.40
codegen_flags: <defaults>
</compile_context>

<pallas_src>
import functools

import jax
import jax.numpy as jnp
from jax.experimental import pallas as pl
from jax.experimental.pallas import tpu as pltpu

_NEG_INF = -1e30


def _round_up(x, m):
    return ((x + m - 1) // m) * m


def policy_kernel(x_ref, w1_ref, b1_ref, w2_ref, b2_ref, out_ref, *, num_actions):
    # x arrives as f32; cast to bf16 on the VPU just before the MXU (halves the
    # x-side HBM traffic vs a separate wrapper-side cast pass).
    x = x_ref[...].astype(jnp.bfloat16)
    # fc1: [TB, n] @ [n, H] with f32 accumulation; bias + ReLU in f32.
    h = jnp.dot(x, w1_ref[...], preferred_element_type=jnp.float32)
    h = jnp.maximum(h + b1_ref[...], 0.0)
    # fc2: [TB, H] @ [H, A_pad] with f32 accumulation.  Padded action lanes have
    # zero weight columns and a -1e30 bias, so they exp() to 0 below without any
    # explicit iota/where masking pass.
    logits = jnp.dot(h.astype(jnp.bfloat16), w2_ref[...],
                     preferred_element_type=jnp.float32)
    logits = logits + b2_ref[...]
    # numerically stable softmax in f32 with exact normalization.
    m = jnp.max(logits, axis=-1, keepdims=True)
    e = jnp.exp(logits - m)
    denom = jnp.sum(e, axis=-1, keepdims=True)
    probs = e / denom
    # store only the real action lanes; output array is (B, A), not lane-padded.
    out_ref[...] = probs[:, :num_actions].astype(out_ref.dtype)


def prepare_params(w1, b1, w2, b2):
    """One-time parameter prep: bf16 weight casts + lane padding of fc2 (do NOT
    redo this per forward call)."""
    n, H = w1.shape
    A = w2.shape[1]
    A_pad = _round_up(A, 128)
    w1b = w1.astype(jnp.bfloat16)
    b1f = b1.astype(jnp.float32).reshape(1, H)
    w2b = w2.astype(jnp.bfloat16)
    b2f = b2.astype(jnp.float32).reshape(1, A)
    if A_pad != A:
        w2b = jnp.pad(w2b, ((0, 0), (0, A_pad - A)))
        # fold the action mask into the bias: padded lanes -> -1e30 -> exp() == 0
        b2f = jnp.pad(b2f, ((0, 0), (0, A_pad - A)), constant_values=_NEG_INF)
    return w1b, b1f, w2b, b2f, A


def policy_forward(h_t, params, *, block_b=1024):
    """h_t: [B, n] float; params: output of prepare_params(...)."""
    w1b, b1f, w2b, b2f, A = params
    B, n = h_t.shape
    H = w1b.shape[1]
    A_pad = w2b.shape[1]

    # Batch tile: multiple of 8; aim for >= 2 tiles when B >= 16 so v7x's two
    # TensorCores both get work from the parallel grid axis.
    B8 = _round_up(B, 8)
    tb_cap = _round_up(block_b, 8)
    if B8 >= 16:
        TB = min(tb_cap, _round_up(pl.cdiv(B8, 2), 8))
    else:
        TB = B8
    B_pad = _round_up(B, TB)
    grid = (B_pad // TB,)

    x = h_t.astype(jnp.float32)
    if B_pad != B:
        x = jnp.pad(x, ((0, B_pad - B), (0, 0)))   # zero rows; softmax of them is discarded

    vmem = pltpu.MemorySpace.VMEM
    x_spec = pl.BlockSpec((TB, n), lambda i: (i, 0), memory_space=vmem)
    # constant block index -> weights/biases stay VMEM-resident across grid steps
    w1_spec = pl.BlockSpec((n, H), lambda i: (0, 0), memory_space=vmem)
    b1_spec = pl.BlockSpec((1, H), lambda i: (0, 0), memory_space=vmem)
    w2_spec = pl.BlockSpec((H, A_pad), lambda i: (0, 0), memory_space=vmem)
    b2_spec = pl.BlockSpec((1, A_pad), lambda i: (0, 0), memory_space=vmem)
    # output last dim equals the full array dim (A) -> legal block, no padded writeback
    out_spec = pl.BlockSpec((TB, A), lambda i: (i, 0), memory_space=vmem)

    cost = pl.CostEstimate(
        flops=2 * B_pad * (n * H + H * A_pad),
        transcendentals=B_pad * A_pad,
        bytes_accessed=(x.size * 4 + w1b.size * 2 + b1f.size * 4
                        + w2b.size * 2 + b2f.size * 4 + B_pad * A * 4),
    )

    out = pl.pallas_call(
        functools.partial(policy_kernel, num_actions=A),
        out_shape=jax.ShapeDtypeStruct((B_pad, A), jnp.float32),
        grid=grid,
        in_specs=[x_spec, w1_spec, b1_spec, w2_spec, b2_spec],
        out_specs=out_spec,
        compiler_params=pltpu.CompilerParams(
            dimension_semantics=("parallel",),     # v7x: shard batch tiles across 2 TCs
            vmem_limit_bytes=32 * 1024 * 1024,
        ),
        cost_estimate=cost,
    )(x, w1b, b1f, w2b, b2f)

    return out if B_pad == B else out[:B]


def init_params(key, num_actions, n, hidden_size):
    """Deterministic init mimicking nn.Linear (uniform(-1/sqrt(fan_in), 1/sqrt(fan_in)))."""
    k1, k2, k3, k4 = jax.random.split(key, 4)
    bound1 = 1.0 / jnp.sqrt(n)
    bound2 = 1.0 / jnp.sqrt(hidden_size)
    # Stored as [in, out] (transpose of PyTorch's [out, in]) so the kernel does x @ W.
    w1 = jax.random.uniform(k1, (n, hidden_size), jnp.float32, -bound1, bound1)
    b1 = jax.random.uniform(k2, (1, hidden_size), jnp.float32, -bound1, bound1)
    w2 = jax.random.uniform(k3, (hidden_size, num_actions), jnp.float32, -bound2, bound2)
    b2 = jax.random.uniform(k4, (1, num_actions), jnp.float32, -bound2, bound2)
    return w1, b1, w2, b2


if __name__ == "__main__":
    num_actions = 8
    n = 16
    hidden_size = 32
    batch = 2

    key = jax.random.PRNGKey(0)
    k_x, k_p = jax.random.split(key)
    h_t = jax.random.normal(k_x, (batch, n), dtype=jnp.float32)
    w1, b1, w2, b2 = init_params(k_p, num_actions, n, hidden_size)

    params = prepare_params(w1, b1, w2, b2)       # one-time cast/pad, reused per call
    out = policy_forward(h_t, params)
    jax.block_until_ready(out)

    # Reference in plain JAX with the same bf16-input / f32-accumulation matmuls.
    ref_h = jnp.maximum(
        jnp.dot(h_t.astype(jnp.bfloat16), w1.astype(jnp.bfloat16),
                preferred_element_type=jnp.float32) + b1, 0.0)
    ref_logits = jnp.dot(ref_h.astype(jnp.bfloat16), w2.astype(jnp.bfloat16),
                         preferred_element_type=jnp.float32) + b2
    ref = jax.nn.softmax(ref_logits, axis=-1)

    assert out.shape == (batch, num_actions)
    # Tolerance accounts for bf16 MXU inputs; softmax normalization itself is exact.
    assert jnp.allclose(out, ref, atol=2e-3, rtol=2e-2)
    assert jnp.allclose(jnp.sum(out, axis=-1), 1.0, atol=1e-4)

    print("KERNEL_OK")
</pallas_src>

<mosaic_0001>
module attributes {stable_mosaic.version = 11 : i64} {
  func.func @policy_kernel(%arg0: i32, %arg1: memref<8x16xf32, #tpu.memory_space<vmem>>, %arg2: memref<16x32xbf16, #tpu.memory_space<vmem>>, %arg3: memref<1x32xf32, #tpu.memory_space<vmem>>, %arg4: memref<32x128xbf16, #tpu.memory_space<vmem>>, %arg5: memref<1x128xf32, #tpu.memory_space<vmem>>, %arg6: memref<8x8xf32, #tpu.memory_space<vmem>>) attributes {dimension_semantics = [#tpu.dimension_semantics<parallel>], iteration_bounds = array<i64: 1>, scalar_prefetch = 0 : i64, scratch_operands = 0 : i64, tpu.core_type = #tpu.core_type<tc>, window_params = [{transform_indices = @transform_0, window_bounds = array<i64: 8, 16>}, {pipeline_mode = #tpu.pipeline_mode<synchronous>, transform_indices = @transform_1, window_bounds = array<i64: 16, 32>}, {pipeline_mode = #tpu.pipeline_mode<synchronous>, transform_indices = @transform_2, window_bounds = array<i64: 1, 32>}, {pipeline_mode = #tpu.pipeline_mode<synchronous>, transform_indices = @transform_3, window_bounds = array<i64: 32, 128>}, {pipeline_mode = #tpu.pipeline_mode<synchronous>, transform_indices = @transform_4, window_bounds = array<i64: 1, 128>}, {transform_indices = @transform_5, window_bounds = array<i64: 8, 8>}]} {
    %c0 = arith.constant 0 : index
    %c0_0 = arith.constant 0 : index
    %0 = vector.load %arg1[%c0, %c0_0] : memref<8x16xf32, #tpu.memory_space<vmem>>, vector<8x16xf32>
    %1 = arith.truncf %0 : vector<8x16xf32> to vector<8x16xbf16>
    %c0_1 = arith.constant 0 : index
    %c0_2 = arith.constant 0 : index
    %2 = vector.load %arg2[%c0_1, %c0_2] : memref<16x32xbf16, #tpu.memory_space<vmem>>, vector<16x32xbf16>
    %cst = arith.constant dense<0.000000e+00> : vector<8x32xf32>
    %3 = tpu.matmul %1, %2, %cst {dimension_numbers = #tpu.dot_dimension_numbers<[1], [0], [0], [1], [0, 0, 1, 1], [], []>} : vector<8x16xbf16>, vector<16x32xbf16>, vector<8x32xf32> -> vector<8x32xf32>
    %c0_3 = arith.constant 0 : index
    %c0_4 = arith.constant 0 : index
    %4 = vector.load %arg3[%c0_3, %c0_4] : memref<1x32xf32, #tpu.memory_space<vmem>>, vector<1x32xf32>
    %5 = vector.broadcast %4 : vector<1x32xf32> to vector<8x32xf32>
    %6 = arith.addf %3, %5 : vector<8x32xf32>
    %cst_5 = arith.constant 0.000000e+00 : f32
    %7 = vector.broadcast %cst_5 : f32 to vector<8x32xf32>
    %8 = arith.maximumf %6, %7 : vector<8x32xf32>
    %9 = arith.truncf %8 : vector<8x32xf32> to vector<8x32xbf16>
    %c0_6 = arith.constant 0 : index
    %c0_7 = arith.constant 0 : index
    %10 = vector.load %arg4[%c0_6, %c0_7] : memref<32x128xbf16, #tpu.memory_space<vmem>>, vector<32x128xbf16>
    %cst_8 = arith.constant dense<0.000000e+00> : vector<8x128xf32>
    %11 = tpu.matmul %9, %10, %cst_8 {dimension_numbers = #tpu.dot_dimension_numbers<[1], [0], [0], [1], [0, 0, 1, 1], [], []>} : vector<8x32xbf16>, vector<32x128xbf16>, vector<8x128xf32> -> vector<8x128xf32>
    %c0_9 = arith.constant 0 : index
    %c0_10 = arith.constant 0 : index
    %12 = vector.load %arg5[%c0_9, %c0_10] : memref<1x128xf32, #tpu.memory_space<vmem>>, vector<1x128xf32>
    %13 = vector.broadcast %12 : vector<1x128xf32> to vector<8x128xf32>
    %14 = arith.addf %11, %13 : vector<8x128xf32>
    %cst_11 = arith.constant dense<0xFF800000> : vector<8xf32>
    %15 = vector.multi_reduction <maximumf>, %14, %cst_11 [1] : vector<8x128xf32> to vector<8xf32>
    %16 = vector.shape_cast %15 : vector<8xf32> to vector<8x1xf32>
    %17 = vector.broadcast %16 : vector<8x1xf32> to vector<8x128xf32>
    %18 = arith.subf %14, %17 : vector<8x128xf32>
    %19 = math.exp %18 : vector<8x128xf32>
    %cst_12 = arith.constant dense<0.000000e+00> : vector<8xf32>
    %20 = vector.multi_reduction <add>, %19, %cst_12 [1] : vector<8x128xf32> to vector<8xf32>
    %21 = vector.shape_cast %20 : vector<8xf32> to vector<8x1xf32>
    %22 = vector.broadcast %21 : vector<8x1xf32> to vector<8x128xf32>
    %23 = arith.divf %19, %22 : vector<8x128xf32>
    %24 = vector.extract_strided_slice %23 {offsets = [0, 0], sizes = [8, 8], strides = [1, 1]} : vector<8x128xf32> to vector<8x8xf32>
    %c0_13 = arith.constant 0 : index
    %c0_14 = arith.constant 0 : index
    %25 = vector.load %arg6[%c0_13, %c0_14] : memref<8x8xf32, #tpu.memory_space<vmem>>, vector<8x8xf32>
    tpu.vector_store %arg6[%c0_13, %c0_14], %24 {strides = array<i32>} : memref<8x8xf32, #tpu.memory_space<vmem>>, vector<8x8xf32>,
    return
  }
  func.func @transform_0(%arg0: i32) -> (i32, i32) {
    %c0_i32 = arith.constant 0 : i32
    %c0_i32_0 = arith.constant 0 : i32
    return %arg0, %c0_i32 : i32, i32
  }
  func.func @transform_1(%arg0: i32) -> (i32, i32) {
    %c0_i32 = arith.constant 0 : i32
    %c0_i32_0 = arith.constant 0 : i32
    %c0_i32_1 = arith.constant 0 : i32
    return %c0_i32, %c0_i32_0 : i32, i32
  }
  func.func @transform_2(%arg0: i32) -> (i32, i32) {
    %c0_i32 = arith.constant 0 : i32
    %c0_i32_0 = arith.constant 0 : i32
    %c0_i32_1 = arith.constant 0 : i32
    return %c0_i32, %c0_i32_0 : i32, i32
  }
  func.func @transform_3(%arg0: i32) -> (i32, i32) {
    %c0_i32 = arith.constant 0 : i32
    %c0_i32_0 = arith.constant 0 : i32
    %c0_i32_1 = arith.constant 0 : i32
    return %c0_i32, %c0_i32_0 : i32, i32
  }
  func.func @transform_4(%arg0: i32) -> (i32, i32) {
    %c0_i32 = arith.constant 0 : i32
    %c0_i32_0 = arith.constant 0 : i32
    %c0_i32_1 = arith.constant 0 : i32
    return %c0_i32, %c0_i32_0 : i32, i32
  }
  func.func @transform_5(%arg0: i32) -> (i32, i32) {
    %c0_i32 = arith.constant 0 : i32
    %c0_i32_0 = arith.constant 0 : i32
    return %arg0, %c0_i32 : i32, i32
  }
}

</mosaic_0001>

<llo_original>
// kernel: tpu_custom_call.1
$region0: #{tpu_custom_call.1}
  #allocation0 [shape = 'u32[]', space=smem, size = 0x4, offset = 0x4, fixed_abs, tag = 'smem constant byte address 0x4 - core index']
  #allocation1 [shape = 'u32[144,128]{1,0:T(1,128)}', space=vmem, size = 0x12000, scoped, tag = 'internal scratch']
  %s0 = inlined_call_operand.hbm [shape: f32[8,16], index: 0, kind: input, shape index: {}]
  %s1 = inlined_call_operand.hbm [shape: bf16[16,32], index: 1, kind: input, shape index: {}]
  %s2 = inlined_call_operand.vmem [shape: f32[1,32], index: 2, kind: input, shape index: {}]
  %s3 = inlined_call_operand.hbm [shape: bf16[32,128], index: 3, kind: input, shape index: {}]
  %s4 = inlined_call_operand.vmem [shape: f32[1,128], index: 4, kind: input, shape index: {}]
  %s5 = inlined_call_operand.hbm [shape: f32[8,8], index: 5, kind: output, shape index: {}]
  %s6 = sld [smem:[#allocation0]]
  $region42: #{tpu_custom_call.1} parent=0
    _
  %s8 = ssub.s32 1, %s6
  %s9 = scalar_select 0, %s8, %s6
  $region1: #{tpu_custom_call.1} parent=0
    #allocation2 [shape = 'u8[4096]{0}', space=vmem, size = 0x1000, scoped, tag = 'input window, operand 0, single buffered']
    #allocation3 [shape = 's32[1]{0}', space=sflag, size = 0x4, scoped, tag = 'scoped memory for tpu_custom_call.1']
    #allocation4 [shape = 's32[1]{0}', space=sflag, size = 0x4, scoped, tag = 'scoped memory for tpu_custom_call.1']
    #allocation5 [shape = 'u8[4096]{0}', space=vmem, size = 0x1000, scoped, tag = 'input window, operand 1, single buffered']
    #allocation6 [shape = 's32[1]{0}', space=sflag, size = 0x4, scoped, tag = 'scoped memory for tpu_custom_call.1']
    #allocation7 [shape = 'u8[8192]{0}', space=vmem, size = 0x2000, scoped, tag = 'input window, operand 3, single buffered']
    #allocation8 [shape = 'u8[4096]{0}', space=vmem, size = 0x1000, scoped, tag = 'output window, operand 0, single buffered']
    %10 = vsyncpa [#allocation3], 0
    %11 = vsyncpa [#allocation6], 0
    %12 = vsyncpa [#allocation4], 0
    // Predicated region
    $region2: #{tpu_custom_call.1} parent=1 // pred_check
      _
    $region3: #{tpu_custom_call.1} parent=1 // pred_check_branch
      %14 = sbr.rel (0) target = $region5
    $region4: #{tpu_custom_call.1} parent=1 // pred_region
      %s16 = ssub.s32 128, 128
      %17 = vsyncadd [#allocation3], %s16
      %s19 = sshll.u32 [#allocation2], 4
      %s20 = int_to_ptr.vmem [resolvable:$true] %s19
      %22 = dma.hbm_to_vmem [thread:$0]  %s0, 128, %s20, [#allocation3]
    $region5: #{tpu_custom_call.1} parent=1 // pred_fallthru
      _
    // Predicated region
    $region6: #{tpu_custom_call.1} parent=1 // pred_check
      _
    $region7: #{tpu_custom_call.1} parent=1 // pred_check_branch
      %24 = sbr.rel (0) target = $region9
    $region8: #{tpu_custom_call.1} parent=1 // pred_region
      %s26 = ssub.s32 128, 128
      %27 = vsyncadd [#allocation6], %s26
      %s28 = sshll.u32 [#allocation5], 4
      %s29 = int_to_ptr.vmem [resolvable:$true] %s28
      %34 = dma.hbm_to_vmem [thread:$0]  %s1, 128, %s29, [#allocation6], 64, 64, 4
    $region9: #{tpu_custom_call.1} parent=1 // pred_fallthru
      _
    // Predicated region
    $region10: #{tpu_custom_call.1} parent=1 // pred_check
      _
    $region11: #{tpu_custom_call.1} parent=1 // pred_check_branch
      %36 = sbr.rel (0) target = $region13
    $region12: #{tpu_custom_call.1} parent=1 // pred_region
      _
    $region13: #{tpu_custom_call.1} parent=1 // pred_fallthru
      _
    // Predicated region
    $region14: #{tpu_custom_call.1} parent=1 // pred_check
      _
    $region15: #{tpu_custom_call.1} parent=1 // pred_check_branch
      %38 = sbr.rel (0) target = $region17
    $region16: #{tpu_custom_call.1} parent=1 // pred_region
      %s40 = ssub.s32 256, 256
      %41 = vsyncadd [#allocation6], %s40
      %s42 = sshll.u32 [#allocation7], 4
      %s43 = int_to_ptr.vmem [resolvable:$true] %s42
      %48 = dma.hbm_to_vmem [thread:$0]  %s3, 256, %s43, [#allocation6], 64, 64, 4
    $region17: #{tpu_custom_call.1} parent=1 // pred_fallthru
      _
    // Predicated region
    $region18: #{tpu_custom_call.1} parent=1 // pred_check
      _
    $region19: #{tpu_custom_call.1} parent=1 // pred_check_branch
      %50 = sbr.rel (0) target = $region21
    $region20: #{tpu_custom_call.1} parent=1 // pred_region
      _
    $region21: #{tpu_custom_call.1} parent=1 // pred_fallthru
      _
    // Predicated region
    $region22: #{tpu_custom_call.1} parent=1 // pred_check
      _
    $region23: #{tpu_custom_call.1} parent=1 // pred_check_branch
      %52 = sbr.rel (0) target = $region25
    $region24: #{tpu_custom_call.1} parent=1 // pred_region
      %53 = dma.done [#allocation3], 128
    $region25: #{tpu_custom_call.1} parent=1 // pred_fallthru
      _
    // Predicated region
    $region26: #{tpu_custom_call.1} parent=1 // pred_check
      _
    $region27: #{tpu_custom_call.1} parent=1 // pred_check_branch
      %55 = sbr.rel (0) target = $region29
    $region28: #{tpu_custom_call.1} parent=1 // pred_region
      %56 = dma.done [#allocation6], 128
    $region29: #{tpu_custom_call.1} parent=1 // pred_fallthru
      _
    // Predicated region
    $region30: #{tpu_custom_call.1} parent=1 // pred_check
      _
    $region31: #{tpu_custom_call.1} parent=1 // pred_check_branch
      %58 = sbr.rel (0) target = $region33
    $region32: #{tpu_custom_call.1} parent=1 // pred_region
      %59 = dma.done [#allocation6], 256
    $region33: #{tpu_custom_call.1} parent=1 // pred_fallthru
      _
    %v61 = vld [vmem:[#allocation2] sm:$0xff]
    %v62 = vpack.c.bf16 %v61, %v61
    %v63 = vld [vmem:[#allocation5] sm:$0xf]
    %v64 = vld [vmem:[#allocation5 + $0x4] sm:$0xf]
    %v65 = vld [vmem:[%s2] sm:$0x1]
    %v67 = vlaneseq
    %v68 = vshrl.u32 %v67, 7
    %v69 = vsub.s32 0, %v68
    %v70 = vrot.slane %v65, %v69
    %v74 = vunpack.c.l.b16 %v63
    %v75 = vunpack.c.l.b16 %v64
    %v76 = vpack.c.b16 %v75, %v74
    %vm78 = vcmask 130048
    %v80 = vsel %vm78, %v62, 0
    %82 = vmatprep.subr.bf16.mxu0 0
    %83 = vmatpush1.bf16.msra.mxu0 0
    %84 = vmatprep.subr.bf16.mxu0 0
    %85 = vmatpush1.bf16.msra.mxu0 0
    %86 = vmatprep.subr.bf16.mxu0 0
    %87 = vmatpush1.bf16.msra.mxu0 0
    %88 = vmatprep.subr.bf16.mxu0 0
    %89 = vmatpush1.bf16.msra.mxu0 0
    %90 = vmatprep.subr.bf16.mxu0 0
    %91 = vmatpush1.bf16.msra.mxu0 0
    %92 = vmatprep.subr.bf16.mxu0 0
    %93 = vmatpush1.bf16.msra.mxu0 0
    %94 = vmatprep.subr.bf16.mxu0 0
    %95 = vmatpush1.bf16.msra.mxu0 0
    %96 = vmatprep.subr.bf16.mxu0 0
    %97 = vmatpush1.bf16.msra.mxu0 %v76
    %98 = vmatprep.subr.bf16.mxu0 0
    %99 = vmatpush2.bf16.msra.mxu0 0
    %100 = vmatprep.subr.bf16.mxu0 0
    %101 = vmatpush2.bf16.msra.mxu0 0
    %102 = vmatprep.subr.bf16.mxu0 0
    %103 = vmatpush2.bf16.msra.mxu0 0
    %104 = vmatprep.subr.bf16.mxu0 0
    %105 = vmatpush2.bf16.msra.mxu0 0
    %106 = vmatprep.subr.bf16.mxu0 0
    %107 = vmatpush2.bf16.msra.mxu0 0
    %108 = vmatprep.subr.bf16.mxu0 0
    %109 = vmatpush2.bf16.msra.mxu0 0
    %110 = vmatprep.subr.bf16.mxu0 0
    %111 = vmatpush2.bf16.msra.mxu0 0
    %112 = vmatprep.subr.bf16.mxu0 0
    %113 = vmatpush2.bf16.msra.mxu0 0
    %114 = vmatprep.mubr.bf16.mxu0 0
    %115 = vmatmul.mubr.bf16.gmra.mxu0 %v80
    %v116 = vpop.f32.mrf.mxu0
    %v117 = vadd.f32 %v70, %v116
    %v118 = vpop.f32.mrf.mxu0
    %v119 = vpop.f32.mrf.mxu0
    %v120 = vpop.f32.mrf.mxu0
    %121 = vdwg.mxu0
    %v122 = vmax.f32 %v117, 0.0
    %v123 = vpack.c.bf16 %v122, %v122
    %v124 = vld [vmem:[#allocation7] sm:$0xf]
    %v125 = vld [vmem:[#allocation7 + $0x4] sm:$0xf]
    %v126 = vld [vmem:[#allocation7 + $0x8] sm:$0xf]
    %v127 = vld [vmem:[#allocation7 + $0xc] sm:$0xf]
    %v128 = vld [vmem:[%s4] sm:$0x1]
    %v130 = vlaneseq
    %v131 = vshrl.u32 %v130, 7
    %v132 = vsub.s32 0, %v131
    %v133 = vrot.slane %v128, %v132
    %v139 = vunpack.c.l.b16 %v124
    %v140 = vunpack.c.l.b16 %v125
    %v141 = vunpack.c.l.b16 %v126
    %v142 = vunpack.c.l.b16 %v127
    %v143 = vpack.c.b16 %v140, %v139
    %v144 = vpack.c.b16 %v142, %v141
    %vm147 = vcmask 261120
    %v149 = vsel %vm147, %v123, 0
    %151 = vmatprep.subr.bf16.mxu0 0
    %152 = vmatpush1.bf16.msra.mxu0 0
    %153 = vmatprep.subr.bf16.mxu0 0
    %154 = vmatpush1.bf16.msra.mxu0 0
    %155 = vmatprep.subr.bf16.mxu0 0
    %156 = vmatpush1.bf16.msra.mxu0 0
    %157 = vmatprep.subr.bf16.mxu0 0
    %158 = vmatpush1.bf16.msra.mxu0 0
    %159 = vmatprep.subr.bf16.mxu0 0
    %160 = vmatpush1.bf16.msra.mxu0 0
    %161 = vmatprep.subr.bf16.mxu0 0
    %162 = vmatpush1.bf16.msra.mxu0 0
    %163 = vmatprep.subr.bf16.mxu0 0
    %164 = vmatpush1.bf16.msra.mxu0 %v144
    %165 = vmatprep.subr.bf16.mxu0 0
    %166 = vmatpush1.bf16.msra.mxu0 %v143
    %167 = vmatprep.subr.bf16.mxu0 0
    %168 = vmatpush2.bf16.msra.mxu0 0
    %169 = vmatprep.subr.bf16.mxu0 0
    %170 = vmatpush2.bf16.msra.mxu0 0
    %171 = vmatprep.subr.bf16.mxu0 0
    %172 = vmatpush2.bf16.msra.mxu0 0
    %173 = vmatprep.subr.bf16.mxu0 0
    %174 = vmatpush2.bf16.msra.mxu0 0
    %175 = vmatprep.subr.bf16.mxu0 0
    %176 = vmatpush2.bf16.msra.mxu0 0
    %177 = vmatprep.subr.bf16.mxu0 0
    %178 = vmatpush2.bf16.msra.mxu0 0
    %179 = vmatprep.subr.bf16.mxu0 0
    %180 = vmatpush2.bf16.msra.mxu0 0
    %181 = vmatprep.subr.bf16.mxu0 0
    %182 = vmatpush2.bf16.msra.mxu0 0
    %183 = vmatprep.mubr.bf16.mxu0 0
    %184 = vmatmul.mubr.bf16.gmra.mxu0 %v149
    %v185 = vpop.f32.mrf.mxu0
    %v186 = vadd.f32 %v133, %v185
    %v187 = vpop.f32.mrf.mxu0
    %v188 = vpop.f32.mrf.mxu0
    %v189 = vpop.f32.mrf.mxu0
    %190 = vdwg.mxu0
    %191 = vmax.xlane.f32.xlu0 %v186
    %v192 = vpop.xlane.xlu0 %191
    %v193 = vsub.f32 %v186, %v192
    %v194 = vmul.f32 %v193, 1.442695
    %v195 = vpow.pop %v194
    %196 = vadd.xlane.f32.xlu0 %v195
    %v197 = vpop.xlane.xlu0 %196
    %v198 = vrcp.pop %v197
    %v199 = vmul.f32 %v195, %v198
    %vm200 = vcmask 64512
    %201 = vst.msk [vmem:[#allocation8] sm:$0xff] %vm200, %v199
    // Predicated region
    $region34: #{tpu_custom_call.1} parent=1 // pred_check
      _
    $region35: #{tpu_custom_call.1} parent=1 // pred_check_branch
      %203 = sbr.rel (0) target = $region37
    $region36: #{tpu_custom_call.1} parent=1 // pred_region
      %s205 = ssub.s32 128, 128
      %206 = vsyncadd [#allocation4], %s205
      %s208 = sshll.u32 [#allocation8], 4
      %s209 = int_to_ptr.vmem [resolvable:$true] %s208
      %211 = dma.vmem_to_hbm [thread:$0]  %s209, 128, %s5, [#allocation4]
    $region37: #{tpu_custom_call.1} parent=1 // pred_fallthru
      _
    // Predicated region
    $region38: #{tpu_custom_call.1} parent=1 // pred_check
      _
    $region39: #{tpu_custom_call.1} parent=1 // pred_check_branch
      %213 = sbr.rel (0) target = $region41
    $region40: #{tpu_custom_call.1} parent=1 // pred_region
      %214 = dma.done [#allocation4], 128
    $region41: #{tpu_custom_call.1} parent=1 // pred_fallthru
      _
    %215 = vsyncpa [#allocation3], 1
    %216 = vsyncpa [#allocation6], 1
    %217 = vsyncpa [#allocation4], 1

</llo_original>
